<compile_context>
chip_gen: v7x
topology: tpu7x:2x2x1
jax: 0.10.0
libtpu: 0.0.40
codegen_flags: <defaults>
</compile_context>

<pallas_src>
import functools

import jax
import jax.numpy as jnp
from jax.experimental import pallas as pl
from jax.experimental.pallas import tpu as pltpu


def _round_up(x, m):
    return (x + m - 1) // m * m


# ---------------------------------------------------------------------------
# Pallas kernels
# ---------------------------------------------------------------------------
def _matmul_bias_act_kernel(p_ref, w_ref, b_ref, o_ref, *, relu):
    # (TM, K) @ (K, C) on the MXU with f32 accumulation; bias(+ReLU) epilogue.
    acc = jnp.dot(p_ref[...], w_ref[...], preferred_element_type=jnp.float32)
    y = acc + b_ref[...]
    if relu:
        y = jnp.maximum(y, 0.0)
    o_ref[...] = y.astype(o_ref.dtype)


def _matmul_bias_residual_kernel(p_ref, w_ref, b_ref, r_ref, o_ref):
    # conv matmul + BN bias + f32 residual add (identity shortcut), bf16 store.
    acc = jnp.dot(p_ref[...], w_ref[...], preferred_element_type=jnp.float32)
    o_ref[...] = (acc + b_ref[...] + r_ref[...]).astype(o_ref.dtype)


# ---------------------------------------------------------------------------
# Tiling / compiler-param helpers
# ---------------------------------------------------------------------------
def _tile_m(M, tm_max=2048, min_steps=2):
    """Largest M-tile <= tm_max that is a multiple of 16 (bf16 sublane packing)
    and leaves at least `min_steps` grid steps whenever M allows it, so
    ("parallel",) actually shards across both v7x TensorCores."""
    if M <= 16:
        return M
    tm = min(tm_max, M)
    if M >= 32:
        tm = min(tm, _round_up(pl.cdiv(M, min_steps), 16))
    return max(16, (tm // 16) * 16)


def _mosaic_params(vmem_need_bytes):
    # Budget scoped VMEM explicitly (v7x: 64 MiB physical / 32 MiB default).
    limit = int(min(48 * 2**20, max(16 * 2**20, vmem_need_bytes + (4 << 20))))
    return pltpu.CompilerParams(
        dimension_semantics=("parallel",),
        vmem_limit_bytes=limit)


def _patch_spec(TM, K, grid_m):
    # Triple-buffer the dominant patch stream on long grids (v5e latency hiding);
    # short grids keep the default double buffering.
    if grid_m >= 3:
        return pl.BlockSpec((TM, K), lambda i: (i, 0),
                            pipeline_mode=pl.Buffered(3))
    return pl.BlockSpec((TM, K), lambda i: (i, 0))


# ---------------------------------------------------------------------------
# Pallas wrappers (M-tiled, parallel grid, resident weights)
# ---------------------------------------------------------------------------
def matmul_bias_act(patches, w, bias, *, relu, out_dtype=jnp.bfloat16,
                    tm_max=2048):
    """relu?( patches @ w + bias ) — w has BN scale pre-folded, bf16 operands."""
    M, K = patches.shape
    C = w.shape[1]
    TM = _tile_m(M, tm_max)
    grid_m = pl.cdiv(M, TM)
    ob = jnp.dtype(out_dtype).itemsize

    vmem_need = 3 * TM * K * 2 + 2 * TM * C * ob + K * C * 2 + C * 4
    flops = 2 * M * K * C
    bytes_accessed = M * K * 2 + K * C * 2 + C * 4 + M * C * ob

    return pl.pallas_call(
        functools.partial(_matmul_bias_act_kernel, relu=relu),
        out_shape=jax.ShapeDtypeStruct((M, C), out_dtype),
        grid=(grid_m,),
        in_specs=[
            _patch_spec(TM, K, grid_m),                 # patches tile (bf16)
            pl.BlockSpec((K, C), lambda i: (0, 0)),     # resident weights
            pl.BlockSpec((1, C), lambda i: (0, 0)),     # resident bias (f32)
        ],
        out_specs=pl.BlockSpec((TM, C), lambda i: (i, 0)),
        compiler_params=_mosaic_params(vmem_need),
        cost_estimate=pl.CostEstimate(flops=flops, transcendentals=0,
                                      bytes_accessed=bytes_accessed),
    )(patches, w, bias)


def matmul_bias_residual(patches, w, bias, residual, *, out_dtype=jnp.bfloat16,
                         tm_max=2048):
    """patches @ w + bias + residual (f32 VPU add) — identity-shortcut kernel."""
    M, K = patches.shape
    C = w.shape[1]
    assert residual.shape == (M, C)
    TM = _tile_m(M, tm_max)
    grid_m = pl.cdiv(M, TM)
    ob = jnp.dtype(out_dtype).itemsize

    vmem_need = (3 * TM * K * 2 + 2 * TM * C * 4 + 2 * TM * C * ob
                 + K * C * 2 + C * 4)
    flops = 2 * M * K * C
    bytes_accessed = M * K * 2 + K * C * 2 + C * 4 + M * C * 4 + M * C * ob

    return pl.pallas_call(
        _matmul_bias_residual_kernel,
        out_shape=jax.ShapeDtypeStruct((M, C), out_dtype),
        grid=(grid_m,),
        in_specs=[
            _patch_spec(TM, K, grid_m),                 # patches tile (bf16)
            pl.BlockSpec((K, C), lambda i: (0, 0)),     # resident weights
            pl.BlockSpec((1, C), lambda i: (0, 0)),     # resident bias (f32)
            pl.BlockSpec((TM, C), lambda i: (i, 0)),    # f32 residual tile
        ],
        out_specs=pl.BlockSpec((TM, C), lambda i: (i, 0)),
        compiler_params=_mosaic_params(vmem_need),
        cost_estimate=pl.CostEstimate(flops=flops, transcendentals=0,
                                      bytes_accessed=bytes_accessed),
    )(patches, w, bias, residual)


# ---------------------------------------------------------------------------
# Plain-JAX glue: im2col taps (NHWC), weight / BN folding
# ---------------------------------------------------------------------------
def im2col_taps(x_nhwc, kh, kw, stride, pad):
    """List of (N, Hout, Wout, C) taps in (i, j) order, plus Hout, Wout."""
    N, H, W, C = x_nhwc.shape
    xp = jnp.pad(x_nhwc, ((0, 0), (pad, pad), (pad, pad), (0, 0))) if pad else x_nhwc
    Hout = (H + 2 * pad - kh) // stride + 1
    Wout = (W + 2 * pad - kw) // stride + 1
    taps = [xp[:, i:i + stride * Hout:stride, j:j + stride * Wout:stride, :]
            for i in range(kh) for j in range(kw)]
    return taps, Hout, Wout


def taps_to_matrix(taps):
    """Single concat+reshape: (N*Hout*Wout, sum_of_tap_channels), tap order kept."""
    p = jnp.concatenate(taps, axis=-1)
    N, Ho, Wo, K = p.shape
    return p.reshape(N * Ho * Wo, K)


def torch_weight_to_matrix(w_oihw):
    """PyTorch conv weight (Cout, Cin, kh, kw) -> (kh*kw*Cin, Cout), order (i, j, c)."""
    Cout, Cin, kh, kw = w_oihw.shape
    return jnp.transpose(w_oihw, (2, 3, 1, 0)).reshape(kh * kw * Cin, Cout)


def fold_bn(gamma, beta, running_mean, running_var, eps=1e-5):
    scale = gamma / jnp.sqrt(running_var + eps)
    bias = beta - running_mean * scale
    return scale, bias


# ---------------------------------------------------------------------------
# BasicBlock
# ---------------------------------------------------------------------------
class BasicBlock:
    def __init__(self, in_channels, out_channels, stride, bitW, bitA, key):
        del bitW, bitA  # TODO(synk): LSQ quantization parameters unused (full precision)
        self.in_channels = in_channels
        self.out_channels = out_channels
        self.stride = stride

        ks = jax.random.split(key, 8)

        # Raw parameters (PyTorch layout) kept for the lax.conv reference.
        self.w0 = 0.1 * jax.random.normal(ks[0], (out_channels, in_channels, 3, 3), jnp.float32)
        g0 = 1.0 + 0.1 * jax.random.normal(ks[1], (out_channels,), jnp.float32)
        b0 = 0.1 * jax.random.normal(ks[2], (out_channels,), jnp.float32)
        self.bn0 = fold_bn(g0, b0, jnp.zeros(out_channels), jnp.ones(out_channels))

        self.w1 = 0.1 * jax.random.normal(ks[3], (out_channels, out_channels, 3, 3), jnp.float32)
        g1 = 1.0 + 0.1 * jax.random.normal(ks[4], (out_channels,), jnp.float32)
        b1 = 0.1 * jax.random.normal(ks[5], (out_channels,), jnp.float32)
        self.bn1 = fold_bn(g1, b1, jnp.zeros(out_channels), jnp.ones(out_channels))

        self.has_proj = not (stride == 1 and in_channels == out_channels)
        if self.has_proj:
            self.ws = 0.1 * jax.random.normal(ks[6], (out_channels, in_channels, 1, 1), jnp.float32)
            gs = 1.0 + 0.1 * jax.random.normal(ks[7], (out_channels,), jnp.float32)
            bs = jnp.zeros(out_channels, jnp.float32)
            self.bns = fold_bn(gs, bs, jnp.zeros(out_channels), jnp.ones(out_channels))

        # Kernel-side preprocessed params: BN scale folded into weights,
        # natural Cout width (no lane padding), bf16 weights / f32 biases.
        self.k_w0, self.k_b0 = self._prep(self.w0, *self.bn0)
        k_w1, k_b1 = self._prep(self.w1, *self.bn1)
        if self.has_proj:
            k_ws, k_bs = self._prep(self.ws, *self.bns)
            # Single concatenated-K matmul for kernel 2: [W1 ; Ws] along K,
            # combined BN bias (b1 + bs).
            self.k_w1s = jnp.concatenate([k_w1, k_ws], axis=0)   # (9*Cout + Cin, Cout)
            self.k_b1s = (k_b1 + k_bs).astype(jnp.float32)
        else:
            self.k_w1, self.k_b1 = k_w1, k_b1

    def _prep(self, w_oihw, scale, bias):
        w2d = torch_weight_to_matrix(w_oihw) * scale[None, :]   # fold BN scale
        return w2d.astype(jnp.bfloat16), bias.reshape(1, -1).astype(jnp.float32)

    def forward_nhwc(self, x_nhwc):
        """NHWC in -> NHWC bf16 out. Chain blocks through this to skip the
        NCHW<->NHWC transposes entirely."""
        N = x_nhwc.shape[0]
        Cout = self.out_channels
        # bf16 BEFORE im2col: the 9x patch tensor materializes in bf16.
        x_b = x_nhwc.astype(jnp.bfloat16)

        # res0: conv3x3(stride) + BN + ReLU  (fused Pallas kernel, bf16 output)
        taps0, Hout, Wout = im2col_taps(x_b, 3, 3, self.stride, 1)
        h0 = matmul_bias_act(taps_to_matrix(taps0), self.k_w0, self.k_b0, relu=True)
        h0 = h0.reshape(N, Hout, Wout, Cout)                    # bf16, natural width

        # res1: conv3x3(1) + BN (+ shortcut)
        taps1, _, _ = im2col_taps(h0, 3, 3, 1, 1)
        if self.has_proj:
            # 1x1 projection shortcut fused as a 10th im2col tap -> one matmul.
            sc_taps, _, _ = im2col_taps(x_b, 1, 1, self.stride, 0)
            p1 = taps_to_matrix(taps1 + sc_taps)
            out = matmul_bias_act(p1, self.k_w1s, self.k_b1s, relu=False)
        else:
            # Identity shortcut: f32 residual added on the VPU in the epilogue.
            residual = x_nhwc.astype(jnp.float32).reshape(N * Hout * Wout, Cout)
            out = matmul_bias_residual(taps_to_matrix(taps1), self.k_w1,
                                       self.k_b1, residual)
        return out.reshape(N, Hout, Wout, Cout)                 # bf16

    def __call__(self, x_nchw):
        if self.has_proj:
            # No f32 residual needed -> transpose in bf16 (half the bytes).
            x_nhwc = jnp.transpose(x_nchw.astype(jnp.bfloat16), (0, 2, 3, 1))
        else:
            x_nhwc = jnp.transpose(x_nchw, (0, 2, 3, 1))        # keep f32 residual
        out = self.forward_nhwc(x_nhwc)
        return jnp.transpose(out, (0, 3, 1, 2))                 # bf16 NHWC -> NCHW


# ---------------------------------------------------------------------------
# Pure-JAX reference (f32 lax.conv) for validation
# ---------------------------------------------------------------------------
def reference_forward(block, x_nchw):
    x = x_nchw.astype(jnp.float32)

    def conv(x, w, stride, pad):
        return jax.lax.conv_general_dilated(
            x, w, window_strides=(stride, stride),
            padding=((pad, pad), (pad, pad)),
            dimension_numbers=("NCHW", "OIHW", "NCHW"))

    def bn(x, sb):
        s, b = sb
        return x * s[None, :, None, None] + b[None, :, None, None]

    h = jnp.maximum(bn(conv(x, block.w0, block.stride, 1), block.bn0), 0.0)
    out = bn(conv(h, block.w1, 1, 1), block.bn1)
    if block.has_proj:
        sc = bn(conv(x, block.ws, block.stride, 0), block.bns)
    else:
        sc = x
    return out + sc


if __name__ == "__main__":
    key = jax.random.PRNGKey(0)
    k_x, k_p1, k_p2 = jax.random.split(key, 3)

    N, Cin, H, W = 2, 4, 16, 16
    x = jax.random.normal(k_x, (N, Cin, H, W), jnp.float32)

    # Projection-shortcut path (stride 2, Cin != Cout) — shortcut fused into K.
    blk_a = BasicBlock(Cin, 8, 2, bitW=8, bitA=8, key=k_p1)
    y_a = jax.block_until_ready(blk_a(x))
    ref_a = jax.block_until_ready(reference_forward(blk_a, x))
    assert y_a.shape == (N, 8, H // 2, W // 2), y_a.shape
    err_a = float(jnp.max(jnp.abs(y_a.astype(jnp.float32) - ref_a)))
    assert jnp.allclose(y_a.astype(jnp.float32), ref_a, rtol=2e-2, atol=2e-2), err_a

    # Identity-shortcut path (stride 1, Cin == Cout) — f32 residual VPU add.
    blk_b = BasicBlock(8, 8, 1, bitW=8, bitA=8, key=k_p2)
    y_b = jax.block_until_ready(blk_b(y_a))
    ref_b = jax.block_until_ready(reference_forward(blk_b, y_a))
    assert y_b.shape == y_a.shape, y_b.shape
    err_b = float(jnp.max(jnp.abs(y_b.astype(jnp.float32) - ref_b)))
    assert jnp.allclose(y_b.astype(jnp.float32), ref_b, rtol=2e-2, atol=2e-2), err_b

    print("KERNEL_OK")
</pallas_src>

<mosaic_0001>
module attributes {stable_mosaic.version = 11 : i64} {
  func.func @_matmul_bias_act_kernel(%arg0: i32, %arg1: memref<64x36xbf16, #tpu.memory_space<vmem>>, %arg2: memref<36x8xbf16, #tpu.memory_space<vmem>>, %arg3: memref<1x8xf32, #tpu.memory_space<vmem>>, %arg4: memref<64x8xbf16, #tpu.memory_space<vmem>>) attributes {dimension_semantics = [#tpu.dimension_semantics<parallel>], iteration_bounds = array<i64: 2>, scalar_prefetch = 0 : i64, scratch_operands = 0 : i64, tpu.core_type = #tpu.core_type<tc>, window_params = [{transform_indices = @transform_0, window_bounds = array<i64: 64, 36>}, {pipeline_mode = #tpu.pipeline_mode<synchronous>, transform_indices = @transform_1, window_bounds = array<i64: 36, 8>}, {pipeline_mode = #tpu.pipeline_mode<synchronous>, transform_indices = @transform_2, window_bounds = array<i64: 1, 8>}, {transform_indices = @transform_3, window_bounds = array<i64: 64, 8>}]} {
    %c0 = arith.constant 0 : index
    %c0_0 = arith.constant 0 : index
    %0 = vector.load %arg1[%c0, %c0_0] : memref<64x36xbf16, #tpu.memory_space<vmem>>, vector<64x36xbf16>
    %c0_1 = arith.constant 0 : index
    %c0_2 = arith.constant 0 : index
    %1 = vector.load %arg2[%c0_1, %c0_2] : memref<36x8xbf16, #tpu.memory_space<vmem>>, vector<36x8xbf16>
    %cst = arith.constant dense<0.000000e+00> : vector<64x8xf32>
    %2 = tpu.matmul %0, %1, %cst {dimension_numbers = #tpu.dot_dimension_numbers<[1], [0], [0], [1], [0, 0, 1, 1], [], []>} : vector<64x36xbf16>, vector<36x8xbf16>, vector<64x8xf32> -> vector<64x8xf32>
    %c0_3 = arith.constant 0 : index
    %c0_4 = arith.constant 0 : index
    %3 = vector.load %arg3[%c0_3, %c0_4] : memref<1x8xf32, #tpu.memory_space<vmem>>, vector<1x8xf32>
    %4 = vector.broadcast %3 : vector<1x8xf32> to vector<64x8xf32>
    %5 = arith.addf %2, %4 : vector<64x8xf32>
    %cst_5 = arith.constant 0.000000e+00 : f32
    %6 = vector.broadcast %cst_5 : f32 to vector<64x8xf32>
    %7 = arith.maximumf %5, %6 : vector<64x8xf32>
    %8 = arith.truncf %7 : vector<64x8xf32> to vector<64x8xbf16>
    %c0_6 = arith.constant 0 : index
    %c0_7 = arith.constant 0 : index
    %9 = vector.load %arg4[%c0_6, %c0_7] : memref<64x8xbf16, #tpu.memory_space<vmem>>, vector<64x8xbf16>
    tpu.vector_store %arg4[%c0_6, %c0_7], %8 {strides = array<i32>} : memref<64x8xbf16, #tpu.memory_space<vmem>>, vector<64x8xbf16>,
    return
  }
  func.func @transform_0(%arg0: i32) -> (i32, i32) {
    %c0_i32 = arith.constant 0 : i32
    %c0_i32_0 = arith.constant 0 : i32
    return %arg0, %c0_i32 : i32, i32
  }
  func.func @transform_1(%arg0: i32) -> (i32, i32) {
    %c0_i32 = arith.constant 0 : i32
    %c0_i32_0 = arith.constant 0 : i32
    %c0_i32_1 = arith.constant 0 : i32
    return %c0_i32, %c0_i32_0 : i32, i32
  }
  func.func @transform_2(%arg0: i32) -> (i32, i32) {
    %c0_i32 = arith.constant 0 : i32
    %c0_i32_0 = arith.constant 0 : i32
    %c0_i32_1 = arith.constant 0 : i32
    return %c0_i32, %c0_i32_0 : i32, i32
  }
  func.func @transform_3(%arg0: i32) -> (i32, i32) {
    %c0_i32 = arith.constant 0 : i32
    %c0_i32_0 = arith.constant 0 : i32
    return %arg0, %c0_i32 : i32, i32
  }
}

</mosaic_0001>

<llo_original>
// kernel: tpu_custom_call.1
$region0: #{tpu_custom_call.1}
  #allocation0 [shape = 'u32[]', space=smem, size = 0x4, offset = 0x4, fixed_abs, tag = 'smem constant byte address 0x4 - core index']
  #allocation1 [shape = 'u32[144,128]{1,0:T(1,128)}', space=vmem, size = 0x12000, scoped, tag = 'internal scratch']
  %s0 = inlined_call_operand.vmem [shape: bf16[128,36], index: 0, kind: input, shape index: {}]
  %s1 = inlined_call_operand.vmem [shape: bf16[36,8], index: 1, kind: input, shape index: {}]
  %s2 = inlined_call_operand.vmem [shape: f32[1,8], index: 2, kind: input, shape index: {}]
  %s3 = inlined_call_operand.vmem [shape: bf16[128,8], index: 3, kind: output, shape index: {}]
  %s4 = sld [smem:[#allocation0]]
  $region45: #{tpu_custom_call.1} parent=0
    _
  %s6 = ssub.s32 1, %s4
  %s7 = scalar_select 0, %s6, %s4
  loop: start=0, step=1, limit=4
  $region2: #{tpu_custom_call.1} parent=0 // loop_pre_header
    _
  $region3: #{tpu_custom_call.1} parent=0 // loop_header
    %s9 = sphi 0, %s13
    %p10 = scmp.ge.s32.totalorder %s9, 4
    %s19 = sphi 0, %s21
    %s22 = sphi 0, %s19
    %s23 = sphi 0, %s22
    %s39 = sphi 0, %s23
    %s43 = sphi 0, %s43
    %s45 = sphi 0, %s43
    %s46 = sphi 0, %s45
    %s60 = sphi 0, %s46
    %s64 = sphi 0, %s64
    %s66 = sphi 0, %s64
    %s67 = sphi 0, %s66
    %s81 = sphi 0, %s67
    %s87 = sphi 0, %s89
    %s90 = sphi 0, %s87
    %s91 = sphi 0, %s90
    %s107 = sphi 0, %s91
  $region4: #{tpu_custom_call.1} parent=0 // loop_header_branch
    %12 = sbr.rel (%p10) target = $region8
  $region5: #{tpu_custom_call.1} parent=0 // loop_body
    %s14 = ssub.s32 %s9, 1
    %s15 = ssub.s32 %s9, 2
    %s16 = sadd.s32 %s9, 1
    %s17 = ssub.s32 %s9, %s16
    %p18 = scmp.eq.s32.totalorder %s17, 0
    %s20 = sadd.s32 %s19, 1
    %s21 = scalar_select %p18, %s19, %s20
    %p24 = pneg %p18
    %p25 = scmp.eq.s32.totalorder %s9, 1
    %p26 = por %p24, %p25
    %p27 = scmp.ne.s32.totalorder %s19, %s22
    %p28 = scmp.eq.s32.totalorder %s9, 0
    %p29 = por %p27, %p28
    %p30 = scmp.ne.s32.totalorder %s19, %s22
    %p31 = scmp.eq.s32.totalorder %s14, 1
    %p32 = por %p30, %p31
    %p33 = scmp.ne.s32.totalorder %s22, %s23
    %p34 = scmp.eq.s32.totalorder %s14, 0
    %p35 = por %p33, %p34
    %p36 = scmp.ne.s32.totalorder %s22, %s23
    %p37 = scmp.eq.s32.totalorder %s15, 1
    %p38 = por %p36, %p37
    %p40 = scmp.ne.s32.totalorder %s23, %s39
    %p41 = scmp.eq.s32.totalorder %s15, 0
    %p42 = por %p40, %p41
    %s44 = sadd.s32 %s43, 1
    %p47 = scmp.eq.s32.totalorder %s9, 1
    %p48 = scmp.ne.s32.totalorder %s43, %s45
    %p49 = scmp.eq.s32.totalorder %s9, 0
    %p50 = por %p48, %p49
    %p51 = scmp.ne.s32.totalorder %s43, %s45
    %p52 = scmp.eq.s32.totalorder %s14, 1
    %p53 = por %p51, %p52
    %p54 = scmp.ne.s32.totalorder %s45, %s46
    %p55 = scmp.eq.s32.totalorder %s14, 0
    %p56 = por %p54, %p55
    %p57 = scmp.ne.s32.totalorder %s45, %s46
    %p58 = scmp.eq.s32.totalorder %s15, 1
    %p59 = por %p57, %p58
    %p61 = scmp.ne.s32.totalorder %s46, %s60
    %p62 = scmp.eq.s32.totalorder %s15, 0
    %p63 = por %p61, %p62
    %s65 = sadd.s32 %s64, 1
    %p68 = scmp.eq.s32.totalorder %s9, 1
    %p69 = scmp.ne.s32.totalorder %s64, %s66
    %p70 = scmp.eq.s32.totalorder %s9, 0
    %p71 = por %p69, %p70
    %p72 = scmp.ne.s32.totalorder %s64, %s66
    %p73 = scmp.eq.s32.totalorder %s14, 1
    %p74 = por %p72, %p73
    %p75 = scmp.ne.s32.totalorder %s66, %s67
    %p76 = scmp.eq.s32.totalorder %s14, 0
    %p77 = por %p75, %p76
    %p78 = scmp.ne.s32.totalorder %s66, %s67
    %p79 = scmp.eq.s32.totalorder %s15, 1
    %p80 = por %p78, %p79
    %p82 = scmp.ne.s32.totalorder %s67, %s81
    %p83 = scmp.eq.s32.totalorder %s15, 0
    %p84 = por %p82, %p83
    %s85 = ssub.s32 %s9, %s16
    %p86 = scmp.eq.s32.totalorder %s85, 0
    %s88 = sadd.s32 %s87, 1
    %s89 = scalar_select %p86, %s87, %s88
    %p92 = pneg %p86
    %p93 = scmp.eq.s32.totalorder %s9, 1
    %p94 = por %p92, %p93
    %p95 = scmp.ne.s32.totalorder %s87, %s90
    %p96 = scmp.eq.s32.totalorder %s9, 0
    %p97 = por %p95, %p96
    %p98 = scmp.ne.s32.totalorder %s87, %s90
    %p99 = scmp.eq.s32.totalorder %s14, 1
    %p100 = por %p98, %p99
    %p101 = scmp.ne.s32.totalorder %s90, %s91
    %p102 = scmp.eq.s32.totalorder %s14, 0
    %p103 = por %p101, %p102
    %p104 = scmp.ne.s32.totalorder %s90, %s91
    %p105 = scmp.eq.s32.totalorder %s15, 1
    %p106 = por %p104, %p105
    %p108 = scmp.ne.s32.totalorder %s91, %s107
    %p109 = scmp.eq.s32.totalorder %s15, 0
    %p110 = por %p108, %p109
    %p111 = scmp.le.s32.totalorder 1, %s9
    %p112 = scmp.lt.s32.totalorder %s9, 3
    %p113 = pnand %p111, %p112
    %p114 = pneg %p113
    // Predicated region
    $region9: #{tpu_custom_call.1} parent=5 // pred_check
      _
    $region10: #{tpu_custom_call.1} parent=5 // pred_check_branch
      %116 = sbr.rel (%p113) target = $region12
    $region11: #{tpu_custom_call.1} parent=5 // pred_region
      %s117 = ssub.s32 %s9, 1
      // Predicated region
      $region13: #{tpu_custom_call.1} parent=11 // pred_check
        %p118 = pneg %p56
      $region14: #{tpu_custom_call.1} parent=11 // pred_check_branch
        %120 = sbr.rel (%p118) target = $region16
      $region15: #{tpu_custom_call.1} parent=11 // pred_region
        _
      $region16: #{tpu_custom_call.1} parent=11 // pred_fallthru
        _
      // Predicated region
      $region17: #{tpu_custom_call.1} parent=11 // pred_check
        %p121 = pneg %p77
      $region18: #{tpu_custom_call.1} parent=11 // pred_check_branch
        %123 = sbr.rel (%p121) target = $region20
      $region19: #{tpu_custom_call.1} parent=11 // pred_region
        _
      $region20: #{tpu_custom_call.1} parent=11 // pred_fallthru
        _
    $region12: #{tpu_custom_call.1} parent=5 // pred_fallthru
      _
    %p124 = scmp.lt.s32.totalorder %s9, 2
    // Predicated region
    $region21: #{tpu_custom_call.1} parent=5 // pred_check
      %p125 = pneg %p124
    $region22: #{tpu_custom_call.1} parent=5 // pred_check_branch
      %127 = sbr.rel (%p125) target = $region24
    $region23: #{tpu_custom_call.1} parent=5 // pred_region
      // Predicated region
      $region25: #{tpu_custom_call.1} parent=23 // pred_check
        %p128 = pneg %p29
      $region26: #{tpu_custom_call.1} parent=23 // pred_check_branch
        %130 = sbr.rel (%p128) target = $region28
      $region27: #{tpu_custom_call.1} parent=23 // pred_region
        %s131 = smul.u32 8, %s9
        %p132 = scmp.lt.s32.totalorder %s131, 15
        %s133 = scalar_select %p132, %s131, 15
        %s134 = smul.addr %s133, 4
        %s135 = scalar_lea.vmem %s0, %s134
        %s136 = smul.u32 8, %s9
      $region28: #{tpu_custom_call.1} parent=23 // pred_fallthru
        _
    $region24: #{tpu_custom_call.1} parent=5 // pred_fallthru
      _
    %p137 = scmp.le.s32.totalorder 1, %s9
    %p138 = scmp.lt.s32.totalorder %s9, 3
    %p139 = pnand %p137, %p138
    %p140 = pneg %p139
    // Predicated region
    $region29: #{tpu_custom_call.1} parent=5 // pred_check
      _
    $region30: #{tpu_custom_call.1} parent=5 // pred_check_branch
      %142 = sbr.rel (%p139) target = $region32
    $region31: #{tpu_custom_call.1} parent=5 // pred_region
      %s143 = ssub.s32 %s9, 1
      %s144 = smul.u32 8, %s14
      %p145 = scmp.lt.s32.totalorder %s144, 15
      %s146 = scalar_select %p145, %s144, 15
      %s147 = smul.addr %s146, 4
      %s148 = scalar_lea.vmem %s0, %s147
      %p149 = pneg %p35
      %p150 = pneg %p32
      %p151 = pneg %p56
      %p152 = pneg %p53
      %p153 = pneg %p77
      %p154 = pneg %p74
      %p155 = pneg %p103
      %p156 = pneg %p100
      %s157 = smul.u32 8, %s14
      %p158 = scmp.lt.s32.totalorder %s157, 15
      %s159 = scalar_select %p158, %s157, 15
      %s160 = smul.addr %s159, 4
      %s161 = scalar_lea.vmem %s3, %s160
      %s162 = smul.u32 8, %s14
      %p163 = scmp.lt.s32.totalorder %s162, 15
      %s164 = scalar_select %p163, %s162, 15
      %s165 = smul.addr %s164, 4
      %s166 = scalar_lea.vmem %s0, %s165
      %s167 = smul.u32 8, %s14
      %s168 = smul.u32 8, %s14
      %p169 = scmp.lt.s32.totalorder %s168, 15
      %s170 = scalar_select %p169, %s168, 15
      %s171 = smul.addr %s170, 4
      %s172 = scalar_lea.vmem %s3, %s171
      %s173 = smul.u32 8, %s14
      %v175 = vld [vmem:[%s166] sm:$0xf]
      %v176 = vld [vmem:[%s166 + $0x4] sm:$0xf]
      %v177 = vld [vmem:[%s166 + $0x8] sm:$0xf]
      %v178 = vld [vmem:[%s166 + $0xc] sm:$0xf]
      %v179 = vld [vmem:[%s166 + $0x10] sm:$0xf]
      %v180 = vld [vmem:[%s166 + $0x14] sm:$0xf]
      %v181 = vld [vmem:[%s166 + $0x18] sm:$0xf]
      %v182 = vld [vmem:[%s166 + $0x1c] sm:$0xf]
      %v183 = vld [vmem:[%s1] sm:$0xf]
      %v184 = vld [vmem:[%s1 + $0x4] sm:$0xf]
      %v185 = vld [vmem:[%s1 + $0x8] sm:$0xf]
      %v186 = vld [vmem:[%s1 + $0xc] sm:$0xf]
      %v187 = vld [vmem:[%s1 + $0x10] sm:$0x3]
      %v188 = vld [vmem:[%s2] sm:$0x1]
      %v190 = vlaneseq
      %v191 = vshrl.u32 %v190, 7
      %v192 = vsub.s32 0, %v191
      %v193 = vrot.slane %v188, %v192
      %v203 = vunpack.c.l.b16 %v175
      %v204 = vunpack.c.l.b16 %v176
      %v205 = vunpack.c.l.b16 %v177
      %v206 = vunpack.c.l.b16 %v178
      %v207 = vunpack.c.l.b16 %v179
      %v208 = vunpack.c.l.b16 %v180
      %v209 = vunpack.c.l.b16 %v181
      %v210 = vunpack.c.l.b16 %v182
      %v211 = vpack.c.b16 %v204, %v203
      %v212 = vpack.c.b16 %v206, %v205
      %v213 = vpack.c.b16 %v208, %v207
      %v214 = vpack.c.b16 %v210, %v209
      %v220 = vunpack.c.l.b16 %v183
      %v221 = vunpack.c.l.b16 %v184
      %v222 = vunpack.c.l.b16 %v185
      %v223 = vunpack.c.l.b16 %v186
      %v224 = vunpack.c.l.b16 %v187
      %v225 = vpack.c.b16 %v221, %v220
      %v226 = vpack.c.b16 %v223, %v222
      %v227 = vpack.c.b16 %v224, %v224
      %vm230 = vcmask 293888
      %v232 = vsel %vm230, %v211, 0
      %v235 = vsel %vm230, %v212, 0
      %v238 = vsel %vm230, %v213, 0
      %v241 = vsel %vm230, %v214, 0
      %vm243 = vcmask 1041408
      %v245 = vsel %vm243, %v227, 0
      %247 = vmatprep.subr.bf16.mxu0 0
      %248 = vmatpush1.bf16.msra.mxu0 %v225
      %249 = vmatprep.subr.bf16.mxu0 0
      %250 = vmatpush1.bf16.msra.mxu0 %v226
      %251 = vmatprep.subr.bf16.mxu0 0
      %252 = vmatpush1.bf16.msra.mxu0 %v245
      %253 = vmatprep.subr.bf16.mxu0 0
      %254 = vmatpush1.bf16.msra.mxu0 0
      %255 = vmatprep.subr.bf16.mxu0 0
      %256 = vmatpush1.bf16.msra.mxu0 0
      %257 = vmatprep.subr.bf16.mxu0 0
      %258 = vmatpush1.bf16.msra.mxu0 0
      %259 = vmatprep.subr.bf16.mxu0 0
      %260 = vmatpush1.bf16.msra.mxu0 0
      %261 = vmatprep.subr.bf16.mxu0 0
      %262 = vmatpush1.bf16.msra.mxu0 0
      %263 = vmatprep.subr.bf16.mxu0 0
      %264 = vmatpush1.bf16.msra.mxu0 0
      %265 = vmatprep.subr.bf16.mxu0 0
      %266 = vmatpush1.bf16.msra.mxu0 0
      %267 = vmatprep.subr.bf16.mxu0 0
      %268 = vmatpush1.bf16.msra.mxu0 0
      %269 = vmatprep.subr.bf16.mxu0 0
      %270 = vmatpush1.bf16.msra.mxu0 0
      %271 = vmatprep.subr.bf16.mxu0 0
      %272 = vmatpush1.bf16.msra.mxu0 0
      %273 = vmatprep.subr.bf16.mxu0 0
      %274 = vmatpush1.bf16.msra.mxu0 0
      %275 = vmatprep.subr.bf16.mxu0 0
      %276 = vmatpush1.bf16.msra.mxu0 0
      %277 = vmatprep.subr.bf16.mxu0 0
      %278 = vmatpush1.bf16.msra.mxu0 0
      %279 = vmatprep.mubr.bf16.mxu0 0
      %280 = vmatmul.mubr.bf16.gmra.mrb[0].mxu0 %v232
      %v281 = vpop.f32.mrb[0].mxu0
      %v282 = vadd.f32 %v193, %v281
      %v283 = vpop.f32.mrb[0].mxu0
      %v284 = vpop.f32.mrb[0].mxu0
      %v285 = vadd.f32 %v193, %v284
      %v286 = vpop.f32.mrb[0].mxu0
      %287 = vmatprep.mubr.bf16.mxu0 0
      %288 = vmatmul.mubr.bf16.gmra.mrb[0].mxu0 %v235
      %v289 = vpop.f32.mrb[0].mxu0
      %v290 = vadd.f32 %v193, %v289
      %v291 = vpop.f32.mrb[0].mxu0
      %v292 = vpop.f32.mrb[0].mxu0
      %v293 = vadd.f32 %v193, %v292
      %v294 = vpop.f32.mrb[0].mxu0
      %295 = vmatprep.mubr.bf16.mxu0 0
      %296 = vmatmul.mubr.bf16.gmra.mrb[0].mxu0 %v238
      %v297 = vpop.f32.mrb[0].mxu0
      %v298 = vadd.f32 %v193, %v297
      %v299 = vpop.f32.mrb[0].mxu0
      %v300 = vpop.f32.mrb[0].mxu0
      %v301 = vadd.f32 %v193, %v300
      %v302 = vpop.f32.mrb[0].mxu0
      %303 = vmatprep.mubr.bf16.mxu0 0
      %304 = vmatmul.mubr.bf16.gmra.mrb[0].mxu0 %v241
      %v305 = vpop.f32.mrb[0].mxu0
      %v306 = vadd.f32 %v193, %v305
      %v307 = vpop.f32.mrb[0].mxu0
      %v308 = vpop.f32.mrb[0].mxu0
      %v309 = vadd.f32 %v193, %v308
      %v310 = vpop.f32.mrb[0].mxu0
      %311 = vdwg.mxu0
      %v312 = vmax.f32 %v282, 0.0
      %v313 = vmax.f32 %v285, 0.0
      %v314 = vmax.f32 %v290, 0.0
      %v315 = vmax.f32 %v293, 0.0
      %v316 = vmax.f32 %v298, 0.0
      %v317 = vmax.f32 %v301, 0.0
      %v318 = vmax.f32 %v306, 0.0
      %v319 = vmax.f32 %v309, 0.0
      %v320 = vpack.c.bf16 %v313, %v312
      %v321 = vpack.c.bf16 %v315, %v314
      %v322 = vpack.c.bf16 %v317, %v316
      %v323 = vpack.c.bf16 %v319, %v318
      %v328 = vunpack.c.l.b16 %v320
      %v329 = vunpack.c.h.b16 %v320
      %v330 = vunpack.c.l.b16 %v321
      %v331 = vunpack.c.h.b16 %v321
      %v332 = vunpack.c.l.b16 %v322
      %v333 = vunpack.c.h.b16 %v322
      %v334 = vunpack.c.l.b16 %v323
      %v335 = vunpack.c.h.b16 %v323
      %v336 = vpack.c.b16 %v328, %v328
      %v337 = vpack.c.b16 %v329, %v329
      %v338 = vpack.c.b16 %v330, %v330
      %v339 = vpack.c.b16 %v331, %v331
      %v340 = vpack.c.b16 %v332, %v332
      %v341 = vpack.c.b16 %v333, %v333
      %v342 = vpack.c.b16 %v334, %v334
      %v343 = vpack.c.b16 %v335, %v335
      %vm352 = vcmask 60416
      %353 = vst.msk [vmem:[%s172] sm:$0xf] %vm352, %v336
      %354 = vst.msk [vmem:[%s172 + $0x4] sm:$0xf] %vm352, %v337
      %355 = vst.msk [vmem:[%s172 + $0x8] sm:$0xf] %vm352, %v338
      %356 = vst.msk [vmem:[%s172 + $0xc] sm:$0xf] %vm352, %v339
      %357 = vst.msk [vmem:[%s172 + $0x10] sm:$0xf] %vm352, %v340
      %358 = vst.msk [vmem:[%s172 + $0x14] sm:$0xf] %vm352, %v341
      %359 = vst.msk [vmem:[%s172 + $0x18] sm:$0xf] %vm352, %v342
      %360 = vst.msk [vmem:[%s172 + $0x1c] sm:$0xf] %vm352, %v343
      %s361 = smul.u32 8, %s14
      %p362 = scmp.lt.s32.totalorder %s361, 15
      %s363 = scalar_select %p362, %s361, 15
      %s364 = smul.addr %s363, 4
      %s365 = scalar_lea.vmem %s3, %s364
      // Predicated region
      $region33: #{tpu_custom_call.1} parent=31 // pred_check
        %p366 = pneg %p100
      $region34: #{tpu_custom_call.1} parent=31 // pred_check_branch
        %368 = sbr.rel (%p366) target = $region36
      $region35: #{tpu_custom_call.1} parent=31 // pred_region
        %s369 = smul.u32 8, %s14
      $region36: #{tpu_custom_call.1} parent=31 // pred_fallthru
        _
    $region32: #{tpu_custom_call.1} parent=5 // pred_fallthru
      _
    %p370 = scmp.le.s32.totalorder 2, %s9
    // Predicated region
    $region37: #{tpu_custom_call.1} parent=5 // pred_check
      %p371 = pneg %p370
    $region38: #{tpu_custom_call.1} parent=5 // pred_check_branch
      %373 = sbr.rel (%p371) target = $region40
    $region39: #{tpu_custom_call.1} parent=5 // pred_region
      %s374 = ssub.s32 %s9, 2
      // Predicated region
      $region41: #{tpu_custom_call.1} parent=39 // pred_check
        %p375 = pneg %p106
      $region42: #{tpu_custom_call.1} parent=39 // pred_check_branch
        %377 = sbr.rel (%p375) target = $region44
      $region43: #{tpu_custom_call.1} parent=39 // pred_region
        %s378 = smul.u32 8, %s15
        %p379 = scmp.lt.s32.totalorder %s378, 15
        %s380 = scalar_select %p379, %s378, 15
        %s381 = smul.addr %s380, 4
        %s382 = scalar_lea.vmem %s3, %s381
      $region44: #{tpu_custom_call.1} parent=39 // pred_fallthru
        _
    $region40: #{tpu_custom_call.1} parent=5 // pred_fallthru
      _
  $region6: #{tpu_custom_call.1} parent=0 // loop_footer
    %s13 = sadd.s32 1, %s9
  $region7: #{tpu_custom_call.1} parent=0 // loop_footer_branch
    %8 = sbr.rel target = $region3
  $region8: #{tpu_custom_call.1} parent=0 // loop_exit
    _

</llo_original>
